<compile_context>
chip_gen: v6e
topology: v6e:2x2x1
jax: 0.10.0
libtpu: 0.0.40
codegen_flags: <defaults>
</compile_context>

<pallas_src>
import functools

import jax
import jax.numpy as jnp
from jax.experimental import pallas as pl
from jax.experimental.pallas import tpu as pltpu


def _round_up(x, m):
    return ((x + m - 1) // m) * m


def _attention_kernel(hid_ref, enc_ref, wa_ref, wb_ref, bias_ref, v_ref,
                      out_ref, hb_ref, *, t_valid, t_padded, elem_bf16):
    # hid_ref : (Bt, Hp)      bf16  hidden states for this batch chunk
    # enc_ref : (Bt, Tt, Hp)  bf16  encoder-output tile
    # wa_ref  : (Hp, Hp)      bf16  hidden half of W.T   (resident)
    # wb_ref  : (Hp, Hp)      bf16  encoder half of W.T  (resident)
    # bias_ref: (1, Hp)       f32   bias                 (resident)
    # v_ref   : (1, 1, Hp)    f32   scoring vector       (resident)
    # out_ref : (Bt, Tp)      f32   raw scores -> softmax (resident over T axis)
    # hb_ref  : (Bt, 1, Hp)   f32   VMEM scratch: hidden @ Wa + bias
    Bt, Tt, Hp = enc_ref.shape
    t = pl.program_id(1)

    # Hidden-side projection: once per batch chunk, reused for every T tile.
    @pl.when(t == 0)
    def _():
        hb = jnp.dot(hid_ref[...], wa_ref[...],
                     preferred_element_type=jnp.float32) + bias_ref[...]
        hb_ref[...] = hb.reshape(Bt, 1, Hp)

    # Encoder-side GEMM for this tile: one (Bt*Tt, Hp) x (Hp, Hp) bf16 MXU GEMM.
    enc2d = enc_ref[...].reshape(Bt * Tt, Hp)
    e2 = jnp.dot(enc2d, wb_ref[...], preferred_element_type=jnp.float32)
    x = e2.reshape(Bt, Tt, Hp) + hb_ref[...]

    # energy = tanh(...): bf16 EUP path on v6e/v7x, f32 on v5e (no bf16 EUP).
    if elem_bf16:
        energy = jnp.tanh(x.astype(jnp.bfloat16)).astype(jnp.float32)
    else:
        energy = jnp.tanh(x)

    # score[b, t] = sum_h v[h] * energy[b, t, h]; padded H lanes contribute 0.
    scores = jnp.sum(energy * v_ref[...], axis=-1)               # (Bt, Tt) f32

    # Stash raw scores for this tile into the resident output block.
    start = pl.multiple_of(t * Tt, Tt)
    out_ref[:, pl.ds(start, Tt)] = scores

    # Last T step: mask padded time positions and softmax the full row in place.
    @pl.when(t == pl.num_programs(1) - 1)
    def _():
        s = out_ref[...]
        if t_valid < t_padded:        # static: skip mask when T is lane-aligned
            lane = jax.lax.broadcasted_iota(jnp.int32, s.shape, 1)
            s = jnp.where(lane < t_valid, s, -jnp.inf)
        m = jnp.max(s, axis=-1, keepdims=True)
        e = jnp.exp(s - m)
        out_ref[...] = e / jnp.sum(e, axis=-1, keepdims=True)


def attention_forward(hidden, encoder_outputs, W, bias, v, *, block_b=8):
    """hidden: (B, H), encoder_outputs: (B, T, H), W: (H, 2H), bias/v: (H,)
    Returns softmax attention weights of shape (B, 1, T), matching the module."""
    B, H = hidden.shape
    _, T, _ = encoder_outputs.shape

    # ---- generation-aware sizing -------------------------------------------
    try:
        kind = jax.devices()[0].device_kind.lower()
    except Exception:  # pragma: no cover - no device info available
        kind = ""
    is_v7 = "v7" in kind
    elem_bf16 = is_v7 or ("v6" in kind)            # bf16 EUP/VPU only on v6e/v7x
    vmem_limit = (48 if is_v7 else 64) * 1024 * 1024

    Hp = _round_up(H, 128)                          # lane-aligned hidden size

    if B <= block_b:
        Bt = B
    else:
        Bt = max(8, (block_b // 8) * 8)

    def est_vmem(bt, tt, tp):
        return (2 * bt * tt * Hp * 2                # enc double buffer (bf16)
                + 2 * 2 * Hp * Hp * 2               # Wa, Wb (double-buffered bf16)
                + 2 * bt * Hp * 2                   # hidden chunk
                + 2 * (Hp * 4 + Hp * 4)             # bias, v
                + 2 * bt * tp * 4                   # output block (f32)
                + bt * Hp * 4                       # hb scratch
                + 3 * bt * tt * Hp * 4)             # f32 intermediates headroom

    budget = (vmem_limit * 8) // 10
    Tt = min(_round_up(T, 128), 256 if is_v7 else 512)
    while Tt > 128 and est_vmem(Bt, Tt, _round_up(T, Tt)) > budget:
        Tt = max(128, ((Tt // 2) // 128) * 128)
    while Bt > 8 and est_vmem(Bt, Tt, _round_up(T, Tt)) > budget:
        Bt -= 8
    Tp = _round_up(T, Tt)
    Bp = _round_up(B, Bt)

    # ---- operand preparation (bf16 MXU operands, pad only if needed) --------
    Wt = W.T
    wa = Wt[:H].astype(jnp.bfloat16)                # hidden half of the concat W
    wb = Wt[H:].astype(jnp.bfloat16)                # encoder half
    hid_b = hidden.astype(jnp.bfloat16)
    enc_b = encoder_outputs.astype(jnp.bfloat16)
    bias_p = bias.astype(jnp.float32).reshape(1, H)
    v_p = v.astype(jnp.float32).reshape(1, 1, H)

    if Hp != H:
        wa = jnp.pad(wa, ((0, Hp - H), (0, Hp - H)))
        wb = jnp.pad(wb, ((0, Hp - H), (0, Hp - H)))
        bias_p = jnp.pad(bias_p, ((0, 0), (0, Hp - H)))
        v_p = jnp.pad(v_p, ((0, 0), (0, 0), (0, Hp - H)))
    if (Bp, Hp) != (B, H):
        hid_b = jnp.pad(hid_b, ((0, Bp - B), (0, Hp - H)))
    if (Bp, Tp, Hp) != (B, T, H):
        enc_b = jnp.pad(enc_b, ((0, Bp - B), (0, Tp - T), (0, Hp - H)))

    grid_spec = pltpu.PrefetchScalarGridSpec(
        num_scalar_prefetch=0,
        grid=(Bp // Bt, Tp // Tt),
        in_specs=[
            pl.BlockSpec((Bt, Hp), lambda b, t: (b, 0)),          # hidden
            pl.BlockSpec((Bt, Tt, Hp), lambda b, t: (b, t, 0)),   # encoder outputs
            pl.BlockSpec((Hp, Hp), lambda b, t: (0, 0)),          # Wa (resident)
            pl.BlockSpec((Hp, Hp), lambda b, t: (0, 0)),          # Wb (resident)
            pl.BlockSpec((1, Hp), lambda b, t: (0, 0)),           # bias (resident)
            pl.BlockSpec((1, 1, Hp), lambda b, t: (0, 0, 0)),     # v (resident)
        ],
        out_specs=pl.BlockSpec((Bt, Tp), lambda b, t: (b, 0)),    # resident over T
        scratch_shapes=[pltpu.VMEM((Bt, 1, Hp), jnp.float32)],
    )

    cost = pl.CostEstimate(
        flops=int(2 * Bp * Tp * Hp * Hp + 2 * Bp * Hp * Hp + 4 * Bp * Tp * Hp),
        transcendentals=int(Bp * Tp * Hp + Bp * Tp),
        bytes_accessed=int(Bp * Tp * Hp * 2 + 2 * Hp * Hp * 2
                           + Bp * Hp * 2 + Bp * Tp * 4),
    )

    kernel = functools.partial(
        _attention_kernel, t_valid=T, t_padded=Tp, elem_bf16=elem_bf16)

    out2d = pl.pallas_call(
        kernel,
        out_shape=jax.ShapeDtypeStruct((Bp, Tp), jnp.float32),
        grid_spec=grid_spec,
        compiler_params=pltpu.CompilerParams(
            dimension_semantics=("parallel", "arbitrary"),
            vmem_limit_bytes=vmem_limit,
        ),
        cost_estimate=cost,
    )(hid_b, enc_b, wa, wb, bias_p, v_p)

    # Strip padding and restore the (B, 1, T) shape of the PyTorch module.
    return out2d[:B, :T][:, None, :]


def attention_reference(hidden, encoder_outputs, W, bias, v):
    """Pure-JAX f32 reference matching the PyTorch module."""
    H = hidden.shape[1]
    Wt = W.T
    h = hidden[:, None, :]                                            # (B, 1, H)
    energy = jnp.tanh(h @ Wt[:H] + encoder_outputs @ Wt[H:] + bias)   # (B, T, H)
    scores = jnp.einsum("bth,h->bt", energy, v)                       # (B, T)
    return jax.nn.softmax(scores, axis=-1)[:, None, :]                # (B, 1, T)


if __name__ == "__main__":
    B, T, H = 2, 8, 32

    key = jax.random.PRNGKey(0)
    k_h, k_e, k_w, k_b, k_v = jax.random.split(key, 5)

    # Parameter init consistent with nn.Linear(2H, H) and v of size H.
    stdv_lin = 1.0 / jnp.sqrt(jnp.float32(2 * H))
    W = jax.random.uniform(k_w, (H, 2 * H), jnp.float32, -stdv_lin, stdv_lin)
    bias = jax.random.uniform(k_b, (H,), jnp.float32, -stdv_lin, stdv_lin)
    stdv_v = 1.0 / jnp.sqrt(jnp.float32(H))
    v = jax.random.uniform(k_v, (H,), jnp.float32, -stdv_v, stdv_v)

    hidden = jax.random.normal(k_h, (B, H), jnp.float32)
    encoder_outputs = jax.random.normal(k_e, (B, T, H), jnp.float32)

    out = attention_forward(hidden, encoder_outputs, W, bias, v)
    out = jax.block_until_ready(out)

    ref = attention_reference(hidden, encoder_outputs, W, bias, v)
    assert out.shape == (B, 1, T)
    # Tolerance accounts for bf16 MXU operands (and bf16 tanh on v6e/v7x).
    assert jnp.allclose(out, ref, atol=2e-2, rtol=2e-2)
    # Softmax rows should still sum to ~1 (exact reciprocal used).
    assert jnp.allclose(jnp.sum(out, axis=-1), 1.0, atol=1e-3)

    # TODO(synk): the PyTorch `lens` masking path is commented out upstream, so it
    # is intentionally not implemented here.
    print("KERNEL_OK")
</pallas_src>

<mosaic_0001>
module attributes {stable_mosaic.version = 11 : i64} {
  func.func @_attention_kernel(%arg0: i32, %arg1: i32, %arg2: memref<2x128xbf16, #tpu.memory_space<vmem>>, %arg3: memref<2x128x128xbf16, #tpu.memory_space<vmem>>, %arg4: memref<128x128xbf16, #tpu.memory_space<vmem>>, %arg5: memref<128x128xbf16, #tpu.memory_space<vmem>>, %arg6: memref<1x128xf32, #tpu.memory_space<vmem>>, %arg7: memref<1x1x128xf32, #tpu.memory_space<vmem>>, %arg8: memref<2x128xf32, #tpu.memory_space<vmem>>, %arg9: memref<2x1x128xf32, #tpu.memory_space<vmem>>) attributes {dimension_semantics = [#tpu.dimension_semantics<parallel>, #tpu.dimension_semantics<arbitrary>], iteration_bounds = array<i64: 1, 1>, scalar_prefetch = 0 : i64, scratch_operands = 1 : i64, tpu.core_type = #tpu.core_type<tc>, window_params = [{transform_indices = @transform_0, window_bounds = array<i64: 2, 128>}, {transform_indices = @transform_1, window_bounds = array<i64: 2, 128, 128>}, {pipeline_mode = #tpu.pipeline_mode<synchronous>, transform_indices = @transform_2, window_bounds = array<i64: 128, 128>}, {pipeline_mode = #tpu.pipeline_mode<synchronous>, transform_indices = @transform_3, window_bounds = array<i64: 128, 128>}, {pipeline_mode = #tpu.pipeline_mode<synchronous>, transform_indices = @transform_4, window_bounds = array<i64: 1, 128>}, {pipeline_mode = #tpu.pipeline_mode<synchronous>, transform_indices = @transform_5, window_bounds = array<i64: 1, 1, 128>}, {transform_indices = @transform_6, window_bounds = array<i64: 2, 128>}]} {
    %c0_i32 = arith.constant 0 : i32
    %0 = arith.cmpi eq, %arg1, %c0_i32 : i32
    %1 = arith.extui %0 : i1 to i32
    %c0_i32_0 = arith.constant 0 : i32
    %2 = arith.cmpi ne, %1, %c0_i32_0 : i32
    scf.if %2 {
      %c0_15 = arith.constant 0 : index
      %c0_16 = arith.constant 0 : index
      %23 = vector.load %arg2[%c0_15, %c0_16] : memref<2x128xbf16, #tpu.memory_space<vmem>>, vector<2x128xbf16>
      %c0_17 = arith.constant 0 : index
      %c0_18 = arith.constant 0 : index
      %24 = vector.load %arg4[%c0_17, %c0_18] : memref<128x128xbf16, #tpu.memory_space<vmem>>, vector<128x128xbf16>
      %cst_19 = arith.constant dense<0.000000e+00> : vector<2x128xf32>
      %25 = tpu.matmul %23, %24, %cst_19 {dimension_numbers = #tpu.dot_dimension_numbers<[1], [0], [0], [1], [0, 0, 1, 1], [], []>} : vector<2x128xbf16>, vector<128x128xbf16>, vector<2x128xf32> -> vector<2x128xf32>
      %c0_20 = arith.constant 0 : index
      %c0_21 = arith.constant 0 : index
      %26 = vector.load %arg6[%c0_20, %c0_21] : memref<1x128xf32, #tpu.memory_space<vmem>>, vector<1x128xf32>
      %27 = vector.broadcast %26 : vector<1x128xf32> to vector<2x128xf32>
      %28 = arith.addf %25, %27 : vector<2x128xf32>
      %29 = vector.shape_cast %28 : vector<2x128xf32> to vector<2x1x128xf32>
      %c0_22 = arith.constant 0 : index
      %c0_23 = arith.constant 0 : index
      %c0_24 = arith.constant 0 : index
      %30 = vector.load %arg9[%c0_22, %c0_23, %c0_24] : memref<2x1x128xf32, #tpu.memory_space<vmem>>, vector<2x1x128xf32>
      tpu.vector_store %arg9[%c0_22, %c0_23, %c0_24], %29 {strides = array<i32>} : memref<2x1x128xf32, #tpu.memory_space<vmem>>, vector<2x1x128xf32>,
    } else {
    }
    %c0 = arith.constant 0 : index
    %c0_1 = arith.constant 0 : index
    %c0_2 = arith.constant 0 : index
    %3 = vector.load %arg3[%c0, %c0_1, %c0_2] : memref<2x128x128xbf16, #tpu.memory_space<vmem>>, vector<2x128x128xbf16>
    %4 = vector.shape_cast %3 : vector<2x128x128xbf16> to vector<256x128xbf16>
    %c0_3 = arith.constant 0 : index
    %c0_4 = arith.constant 0 : index
    %5 = vector.load %arg5[%c0_3, %c0_4] : memref<128x128xbf16, #tpu.memory_space<vmem>>, vector<128x128xbf16>
    %cst = arith.constant dense<0.000000e+00> : vector<256x128xf32>
    %6 = tpu.matmul %4, %5, %cst {dimension_numbers = #tpu.dot_dimension_numbers<[1], [0], [0], [1], [0, 0, 1, 1], [], []>} : vector<256x128xbf16>, vector<128x128xbf16>, vector<256x128xf32> -> vector<256x128xf32>
    %7 = vector.shape_cast %6 : vector<256x128xf32> to vector<2x128x128xf32>
    %c0_5 = arith.constant 0 : index
    %c0_6 = arith.constant 0 : index
    %c0_7 = arith.constant 0 : index
    %8 = vector.load %arg9[%c0_5, %c0_6, %c0_7] : memref<2x1x128xf32, #tpu.memory_space<vmem>>, vector<2x1x128xf32>
    %9 = vector.broadcast %8 : vector<2x1x128xf32> to vector<2x128x128xf32>
    %10 = arith.addf %7, %9 : vector<2x128x128xf32>
    %11 = math.tanh %10 : vector<2x128x128xf32>
    %c0_8 = arith.constant 0 : index
    %c0_9 = arith.constant 0 : index
    %c0_10 = arith.constant 0 : index
    %12 = vector.load %arg7[%c0_8, %c0_9, %c0_10] : memref<1x1x128xf32, #tpu.memory_space<vmem>>, vector<1x1x128xf32>
    %13 = vector.broadcast %12 : vector<1x1x128xf32> to vector<2x128x128xf32>
    %14 = arith.mulf %11, %13 : vector<2x128x128xf32>
    %cst_11 = arith.constant dense<0.000000e+00> : vector<2x128xf32>
    %15 = vector.multi_reduction <add>, %14, %cst_11 [2] : vector<2x128x128xf32> to vector<2x128xf32>
    %c128_i32 = arith.constant 128 : i32
    %16 = arith.muli %arg1, %c128_i32 : i32
    %17 = tpu.assume_multiple %16, 128 : i32
    %c0_12 = arith.constant 0 : index
    %18 = arith.index_cast %17 : i32 to index
    %19 = vector.load %arg8[%c0_12, %18] : memref<2x128xf32, #tpu.memory_space<vmem>>, vector<2x128xf32>
    tpu.vector_store %arg8[%c0_12, %18], %15 {strides = array<i32>} : memref<2x128xf32, #tpu.memory_space<vmem>>, vector<2x128xf32>,
    %c0_i32_13 = arith.constant 0 : i32
    %20 = arith.cmpi eq, %arg1, %c0_i32_13 : i32
    %21 = arith.extui %20 : i1 to i32
    %c0_i32_14 = arith.constant 0 : i32
    %22 = arith.cmpi ne, %21, %c0_i32_14 : i32
    scf.if %22 {
      %c0_15 = arith.constant 0 : index
      %c0_16 = arith.constant 0 : index
      %23 = vector.load %arg8[%c0_15, %c0_16] : memref<2x128xf32, #tpu.memory_space<vmem>>, vector<2x128xf32>
      %24 = tpu.iota {dimensions = array<i32: 1>} : vector<2x128xi32>
      %c8_i32 = arith.constant 8 : i32
      %25 = vector.broadcast %c8_i32 : i32 to vector<2x128xi32>
      %26 = arith.cmpi slt, %24, %25 : vector<2x128xi32>
      %cst_17 = arith.constant 0xFF800000 : f32
      %27 = vector.broadcast %cst_17 : f32 to vector<2x128xf32>
      %28 = arith.select %26, %23, %27 : vector<2x128xi1>, vector<2x128xf32>
      %cst_18 = arith.constant dense<0xFF800000> : vector<2xf32>
      %29 = vector.multi_reduction <maximumf>, %28, %cst_18 [1] : vector<2x128xf32> to vector<2xf32>
      %30 = vector.shape_cast %29 : vector<2xf32> to vector<2x1xf32>
      %31 = vector.broadcast %30 : vector<2x1xf32> to vector<2x128xf32>
      %32 = arith.subf %28, %31 : vector<2x128xf32>
      %33 = math.exp %32 : vector<2x128xf32>
      %cst_19 = arith.constant dense<0.000000e+00> : vector<2xf32>
      %34 = vector.multi_reduction <add>, %33, %cst_19 [1] : vector<2x128xf32> to vector<2xf32>
      %35 = vector.shape_cast %34 : vector<2xf32> to vector<2x1xf32>
      %36 = vector.broadcast %35 : vector<2x1xf32> to vector<2x128xf32>
      %37 = arith.divf %33, %36 : vector<2x128xf32>
      %c0_20 = arith.constant 0 : index
      %c0_21 = arith.constant 0 : index
      %38 = vector.load %arg8[%c0_20, %c0_21] : memref<2x128xf32, #tpu.memory_space<vmem>>, vector<2x128xf32>
      tpu.vector_store %arg8[%c0_20, %c0_21], %37 {strides = array<i32>} : memref<2x128xf32, #tpu.memory_space<vmem>>, vector<2x128xf32>,
    } else {
    }
    return
  }
  func.func @transform_0(%arg0: i32, %arg1: i32) -> (i32, i32) {
    %c0_i32 = arith.constant 0 : i32
    %c0_i32_0 = arith.constant 0 : i32
    return %arg0, %c0_i32 : i32, i32
  }
  func.func @transform_1(%arg0: i32, %arg1: i32) -> (i32, i32, i32) {
    %c0_i32 = arith.constant 0 : i32
    %c0_i32_0 = arith.constant 0 : i32
    return %arg0, %arg1, %c0_i32 : i32, i32, i32
  }
  func.func @transform_2(%arg0: i32, %arg1: i32) -> (i32, i32) {
    %c0_i32 = arith.constant 0 : i32
    %c0_i32_0 = arith.constant 0 : i32
    %c0_i32_1 = arith.constant 0 : i32
    return %c0_i32, %c0_i32_0 : i32, i32
  }
  func.func @transform_3(%arg0: i32, %arg1: i32) -> (i32, i32) {
    %c0_i32 = arith.constant 0 : i32
    %c0_i32_0 = arith.constant 0 : i32
    %c0_i32_1 = arith.constant 0 : i32
    return %c0_i32, %c0_i32_0 : i32, i32
  }
  func.func @transform_4(%arg0: i32, %arg1: i32) -> (i32, i32) {
    %c0_i32 = arith.constant 0 : i32
    %c0_i32_0 = arith.constant 0 : i32
    %c0_i32_1 = arith.constant 0 : i32
    return %c0_i32, %c0_i32_0 : i32, i32
  }
  func.func @transform_5(%arg0: i32, %arg1: i32) -> (i32, i32, i32) {
    %c0_i32 = arith.constant 0 : i32
    %c0_i32_0 = arith.constant 0 : i32
    %c0_i32_1 = arith.constant 0 : i32
    %c0_i32_2 = arith.constant 0 : i32
    return %c0_i32, %c0_i32_0, %c0_i32_1 : i32, i32, i32
  }
  func.func @transform_6(%arg0: i32, %arg1: i32) -> (i32, i32) {
    %c0_i32 = arith.constant 0 : i32
    %c0_i32_0 = arith.constant 0 : i32
    return %arg0, %c0_i32 : i32, i32
  }
}

</mosaic_0001>

<llo_original>
// kernel: tpu_custom_call.1
$region0: #{tpu_custom_call.1}
  #allocation0 [shape = 'u32[]', space=smem, size = 0x4, offset = 0x4, fixed_abs, tag = 'smem constant byte address 0x4 - core index']
  #allocation1 [shape = 'u32[144,128]{1,0:T(1,128)}', space=vmem, size = 0x12000, scoped, tag = 'internal scratch']
  #allocation2 [shape = 'f32[2,1,128]{2,1,0:T(1,128)}', space=vmem, size = 0x400, scoped, tag = 'scratch operand']
  %s0 = inlined_call_operand.hbm [shape: bf16[2,128], index: 0, kind: input, shape index: {}]
  %s1 = inlined_call_operand.hbm [shape: bf16[2,128,128], index: 1, kind: input, shape index: {}]
  %s2 = inlined_call_operand.hbm [shape: bf16[128,128], index: 2, kind: input, shape index: {}]
  %s3 = inlined_call_operand.hbm [shape: bf16[128,128], index: 3, kind: input, shape index: {}]
  %s4 = inlined_call_operand.vmem [shape: f32[1,128], index: 4, kind: input, shape index: {}]
  %s5 = inlined_call_operand.vmem [shape: f32[1,1,128], index: 5, kind: input, shape index: {}]
  %s6 = inlined_call_operand.hbm [shape: f32[2,128], index: 6, kind: output, shape index: {}]
  %s7 = sld [smem:[#allocation0]]
  $region58: #{tpu_custom_call.1} parent=0
    _
  %s9 = ssub.s32 1, %s7
  %s10 = scalar_select 0, %s9, %s7
  $region1: #{tpu_custom_call.1} parent=0
    #allocation3 [shape = 'u8[512]{0}', space=vmem, size = 0x400, scoped, tag = 'input window, operand 0, single buffered']
    #allocation4 [shape = 's32[1]{0}', space=sflag, size = 0x4, scoped, tag = 'scoped memory for tpu_custom_call.1']
    #allocation5 [shape = 's32[1]{0}', space=sflag, size = 0x4, scoped, tag = 'scoped memory for tpu_custom_call.1']
    #allocation6 [shape = 'u8[65536]{0}', space=vmem, size = 0x10000, scoped, tag = 'input window, operand 1, single buffered']
    #allocation7 [shape = 's32[1]{0}', space=sflag, size = 0x4, scoped, tag = 'scoped memory for tpu_custom_call.1']
    #allocation8 [shape = 'u8[32768]{0}', space=vmem, size = 0x8000, scoped, tag = 'input window, operand 2, single buffered']
    #allocation9 [shape = 'u8[32768]{0}', space=vmem, size = 0x8000, scoped, tag = 'input window, operand 3, single buffered']
    #allocation10 [shape = 's32[1]{0}', space=sflag, size = 0x4, scoped, tag = 'scoped memory for tpu_custom_call.1']
    #allocation11 [shape = 'u8[1024]{0}', space=vmem, size = 0x400, scoped, tag = 'output window, operand 0, single buffered']
    %11 = vsyncpa [#allocation4], 0
    %12 = vsyncpa [#allocation7], 0
    %13 = vsyncpa [#allocation10], 0
    %14 = vsyncpa [#allocation5], 0
    // Predicated region
    $region2: #{tpu_custom_call.1} parent=1 // pred_check
      _
    $region3: #{tpu_custom_call.1} parent=1 // pred_check_branch
      %16 = sbr.rel (0) target = $region5
    $region4: #{tpu_custom_call.1} parent=1 // pred_region
      %s18 = ssub.s32 16, 16
      %19 = vsyncadd [#allocation4], %s18
      %s21 = sshll.u32 [#allocation3], 4
      %s22 = int_to_ptr.vmem [resolvable:$true] %s21
      %24 = dma.hbm_to_vmem [thread:$0]  %s0, 16, %s22, [#allocation4]
    $region5: #{tpu_custom_call.1} parent=1 // pred_fallthru
      _
    // Predicated region
    $region6: #{tpu_custom_call.1} parent=1 // pred_check
      _
    $region7: #{tpu_custom_call.1} parent=1 // pred_check_branch
      %26 = sbr.rel (0) target = $region9
    $region8: #{tpu_custom_call.1} parent=1 // pred_region
      %s28 = ssub.s32 2048, 2048
      %29 = vsyncadd [#allocation7], %s28
      %s30 = sshll.u32 [#allocation6], 4
      %s31 = int_to_ptr.vmem [resolvable:$true] %s30
      %36 = dma.hbm_to_vmem [thread:$0]  %s1, 2048, %s31, [#allocation7], 64, 64, 4
    $region9: #{tpu_custom_call.1} parent=1 // pred_fallthru
      _
    // Predicated region
    $region10: #{tpu_custom_call.1} parent=1 // pred_check
      _
    $region11: #{tpu_custom_call.1} parent=1 // pred_check_branch
      %38 = sbr.rel (0) target = $region13
    $region12: #{tpu_custom_call.1} parent=1 // pred_region
      %s40 = ssub.s32 1024, 1024
      %41 = vsyncadd [#allocation7], %s40
      %s42 = sshll.u32 [#allocation8], 4
      %s43 = int_to_ptr.vmem [resolvable:$true] %s42
      %48 = dma.hbm_to_vmem [thread:$0]  %s2, 1024, %s43, [#allocation7], 64, 64, 4
    $region13: #{tpu_custom_call.1} parent=1 // pred_fallthru
      _
    // Predicated region
    $region14: #{tpu_custom_call.1} parent=1 // pred_check
      _
    $region15: #{tpu_custom_call.1} parent=1 // pred_check_branch
      %50 = sbr.rel (0) target = $region17
    $region16: #{tpu_custom_call.1} parent=1 // pred_region
      %s52 = ssub.s32 1024, 1024
      %53 = vsyncadd [#allocation10], %s52
      %s54 = sshll.u32 [#allocation9], 4
      %s55 = int_to_ptr.vmem [resolvable:$true] %s54
      %60 = dma.hbm_to_vmem [thread:$0]  %s3, 1024, %s55, [#allocation10], 64, 64, 4
    $region17: #{tpu_custom_call.1} parent=1 // pred_fallthru
      _
    // Predicated region
    $region18: #{tpu_custom_call.1} parent=1 // pred_check
      _
    $region19: #{tpu_custom_call.1} parent=1 // pred_check_branch
      %62 = sbr.rel (0) target = $region21
    $region20: #{tpu_custom_call.1} parent=1 // pred_region
      _
    $region21: #{tpu_custom_call.1} parent=1 // pred_fallthru
      _
    // Predicated region
    $region22: #{tpu_custom_call.1} parent=1 // pred_check
      _
    $region23: #{tpu_custom_call.1} parent=1 // pred_check_branch
      %64 = sbr.rel (0) target = $region25
    $region24: #{tpu_custom_call.1} parent=1 // pred_region
      _
    $region25: #{tpu_custom_call.1} parent=1 // pred_fallthru
      _
    // Predicated region
    $region26: #{tpu_custom_call.1} parent=1 // pred_check
      _
    $region27: #{tpu_custom_call.1} parent=1 // pred_check_branch
      %66 = sbr.rel (0) target = $region29
    $region28: #{tpu_custom_call.1} parent=1 // pred_region
      %67 = dma.done [#allocation4], 16
    $region29: #{tpu_custom_call.1} parent=1 // pred_fallthru
      _
    // Predicated region
    $region30: #{tpu_custom_call.1} parent=1 // pred_check
      _
    $region31: #{tpu_custom_call.1} parent=1 // pred_check_branch
      %69 = sbr.rel (0) target = $region33
    $region32: #{tpu_custom_call.1} parent=1 // pred_region
      %70 = dma.done [#allocation7], 2048
    $region33: #{tpu_custom_call.1} parent=1 // pred_fallthru
      _
    // Predicated region
    $region34: #{tpu_custom_call.1} parent=1 // pred_check
      _
    $region35: #{tpu_custom_call.1} parent=1 // pred_check_branch
      %72 = sbr.rel (0) target = $region37
    $region36: #{tpu_custom_call.1} parent=1 // pred_region
      %73 = dma.done [#allocation7], 1024
    $region37: #{tpu_custom_call.1} parent=1 // pred_fallthru
      _
    // Predicated region
    $region38: #{tpu_custom_call.1} parent=1 // pred_check
      _
    $region39: #{tpu_custom_call.1} parent=1 // pred_check_branch
      %75 = sbr.rel (0) target = $region41
    $region40: #{tpu_custom_call.1} parent=1 // pred_region
      %76 = dma.done [#allocation10], 1024
    $region41: #{tpu_custom_call.1} parent=1 // pred_fallthru
      _
    %p78 = scmp.eq.s32.totalorder 0, 0
    // Predicated region
    $region42: #{tpu_custom_call.1} parent=1 // pred_check
      %p79 = pneg %p78
    $region43: #{tpu_custom_call.1} parent=1 // pred_check_branch
      %81 = sbr.rel (%p79) target = $region45
    $region44: #{tpu_custom_call.1} parent=1 // pred_region
      %v82 = vld [vmem:[#allocation3] sm:$0x1]
      %v83 = vld [vmem:[#allocation8] sm:$0xf]
      %v84 = vld [vmem:[#allocation8 + $0x4] sm:$0xf]
      %v85 = vld [vmem:[#allocation8 + $0x8] sm:$0xf]
      %v86 = vld [vmem:[#allocation8 + $0xc] sm:$0xf]
      %v87 = vld [vmem:[#allocation8 + $0x10] sm:$0xf]
      %v88 = vld [vmem:[#allocation8 + $0x14] sm:$0xf]
      %v89 = vld [vmem:[#allocation8 + $0x18] sm:$0xf]
      %v90 = vld [vmem:[#allocation8 + $0x1c] sm:$0xf]
      %v91 = vld [vmem:[#allocation8 + $0x20] sm:$0xf]
      %v92 = vld [vmem:[#allocation8 + $0x24] sm:$0xf]
      %v93 = vld [vmem:[#allocation8 + $0x28] sm:$0xf]
      %v94 = vld [vmem:[#allocation8 + $0x2c] sm:$0xf]
      %v95 = vld [vmem:[#allocation8 + $0x30] sm:$0xf]
      %v96 = vld [vmem:[#allocation8 + $0x34] sm:$0xf]
      %v97 = vld [vmem:[#allocation8 + $0x38] sm:$0xf]
      %v98 = vld [vmem:[#allocation8 + $0x3c] sm:$0xf]
      %v99 = vld [vmem:[%s4] sm:$0x1]
      %v101 = vlaneseq
      %v102 = vshrl.u32 %v101, 7
      %v103 = vsub.s32 0, %v102
      %v104 = vrot.slane %v99, %v103
      %v122 = vunpack.c.l.b16 %v83
      %v123 = vunpack.c.l.b16 %v84
      %v124 = vunpack.c.l.b16 %v85
      %v125 = vunpack.c.l.b16 %v86
      %v126 = vunpack.c.l.b16 %v87
      %v127 = vunpack.c.l.b16 %v88
      %v128 = vunpack.c.l.b16 %v89
      %v129 = vunpack.c.l.b16 %v90
      %v130 = vunpack.c.l.b16 %v91
      %v131 = vunpack.c.l.b16 %v92
      %v132 = vunpack.c.l.b16 %v93
      %v133 = vunpack.c.l.b16 %v94
      %v134 = vunpack.c.l.b16 %v95
      %v135 = vunpack.c.l.b16 %v96
      %v136 = vunpack.c.l.b16 %v97
      %v137 = vunpack.c.l.b16 %v98
      %v138 = vpack.c.b16 %v123, %v122
      %v139 = vpack.c.b16 %v125, %v124
      %v140 = vpack.c.b16 %v127, %v126
      %v141 = vpack.c.b16 %v129, %v128
      %v142 = vpack.c.b16 %v131, %v130
      %v143 = vpack.c.b16 %v133, %v132
      %v144 = vpack.c.b16 %v135, %v134
      %v145 = vpack.c.b16 %v137, %v136
      %154 = vmatprep.subr.bf16.mxu0 0
      %155 = vmatpush1.bf16.msra.mxu0 %v145
      %156 = vmatprep.subr.bf16.mxu0 0
      %157 = vmatpush1.bf16.msra.mxu0 %v144
      %158 = vmatprep.subr.bf16.mxu0 0
      %159 = vmatpush1.bf16.msra.mxu0 %v143
      %160 = vmatprep.subr.bf16.mxu0 0
      %161 = vmatpush1.bf16.msra.mxu0 %v142
      %162 = vmatprep.subr.bf16.mxu0 0
      %163 = vmatpush1.bf16.msra.mxu0 %v141
      %164 = vmatprep.subr.bf16.mxu0 0
      %165 = vmatpush1.bf16.msra.mxu0 %v140
      %166 = vmatprep.subr.bf16.mxu0 0
      %167 = vmatpush1.bf16.msra.mxu0 %v139
      %168 = vmatprep.subr.bf16.mxu0 0
      %169 = vmatpush1.bf16.msra.mxu0 %v138
      %170 = vmatprep.subr.bf16.mxu0 0
      %171 = vmatpush2.bf16.msra.mxu0 0
      %172 = vmatprep.subr.bf16.mxu0 0
      %173 = vmatpush2.bf16.msra.mxu0 0
      %174 = vmatprep.subr.bf16.mxu0 0
      %175 = vmatpush2.bf16.msra.mxu0 0
      %176 = vmatprep.subr.bf16.mxu0 0
      %177 = vmatpush2.bf16.msra.mxu0 0
      %178 = vmatprep.subr.bf16.mxu0 0
      %179 = vmatpush2.bf16.msra.mxu0 0
      %180 = vmatprep.subr.bf16.mxu0 0
      %181 = vmatpush2.bf16.msra.mxu0 0
      %182 = vmatprep.subr.bf16.mxu0 0
      %183 = vmatpush2.bf16.msra.mxu0 0
      %184 = vmatprep.subr.bf16.mxu0 0
      %185 = vmatpush2.bf16.msra.mxu0 0
      %186 = vmatprep.mubr.bf16.mxu0 0
      %187 = vmatmul.mubr.bf16.gmra.mxu0 %v82
      %v188 = vpop.f32.mrf.mxu0
      %v189 = vadd.f32 %v104, %v188
      %v190 = vpop.f32.mrf.mxu0
      %v191 = vpop.f32.mrf.mxu0
      %v192 = vpop.f32.mrf.mxu0
      %193 = vdwg.mxu0
      %v196 = vunpack.c.l.s4 1966171168
      %v197 = vunpack.c.0.s8 %v196
      %v198 = vlaneseq
      %v199 = vshrl.u32 %v198, 7
      %v200 = vsub.s32 %v197, %v199
      %v201 = vrot.slane %v189, %v200
      %v202 = vcombine.high %v201, %v201
      %v204 = vunpack.c.l.s4 1966171168
      %v205 = vunpack.c.0.s8 %v204
      %v206 = vlaneseq
      %v207 = vshrl.u32 %v206, 7
      %v208 = vsub.s32 %v205, %v207
      %v209 = vrot.slane %v201, %v208
      %v211 = vunpack.c.l.s4 1966171168
      %v212 = vunpack.c.0.s8 %v211
      %v213 = vlaneseq
      %v214 = vshrl.u32 %v213, 7
      %v215 = vsub.s32 %v212, %v214
      %v216 = vrot.slane %v202, %v215
      %219 = vst [vmem:[#allocation2] sm:$0x1] %v209
      %220 = vst [vmem:[#allocation2 + $0x1] sm:$0x1] %v216
    $region45: #{tpu_custom_call.1} parent=1 // pred_fallthru
      _
    %v221 = vld [vmem:[#allocation6] sm:$0xf]
    %v222 = vld [vmem:[#allocation6 + $0x4] sm:$0xf]
    %v223 = vld [vmem:[#allocation6 + $0x8] sm:$0xf]
    %v224 = vld [vmem:[#allocation6 + $0xc] sm:$0xf]
    %v225 = vld [vmem:[#allocation6 + $0x10] sm:$0xf]
    %v226 = vld [vmem:[#allocation6 + $0x14] sm:$0xf]
    %v227 = vld [vmem:[#allocation6 + $0x18] sm:$0xf]
    %v228 = vld [vmem:[#allocation6 + $0x1c] sm:$0xf]
    %v229 = vld [vmem:[#allocation6 + $0x20] sm:$0xf]
    %v230 = vld [vmem:[#allocation6 + $0x24] sm:$0xf]
    %v231 = vld [vmem:[#allocation6 + $0x28] sm:$0xf]
    %v232 = vld [vmem:[#allocation6 + $0x2c] sm:$0xf]
    %v233 = vld [vmem:[#allocation6 + $0x30] sm:$0xf]
    %v234 = vld [vmem:[#allocation6 + $0x34] sm:$0xf]
    %v235 = vld [vmem:[#allocation6 + $0x38] sm:$0xf]
    %v236 = vld [vmem:[#allocation6 + $0x3c] sm:$0xf]
    %v237 = vld [vmem:[#allocation6 + $0x40] sm:$0xf]
    %v238 = vld [vmem:[#allocation6 + $0x44] sm:$0xf]
    %v239 = vld [vmem:[#allocation6 + $0x48] sm:$0xf]
    %v240 = vld [vmem:[#allocation6 + $0x4c] sm:$0xf]
    %v241 = vld [vmem:[#allocation6 + $0x50] sm:$0xf]
    %v242 = vld [vmem:[#allocation6 + $0x54] sm:$0xf]
    %v243 = vld [vmem:[#allocation6 + $0x58] sm:$0xf]
    %v244 = vld [vmem:[#allocation6 + $0x5c] sm:$0xf]
    %v245 = vld [vmem:[#allocation6 + $0x60] sm:$0xf]
    %v246 = vld [vmem:[#allocation6 + $0x64] sm:$0xf]
    %v247 = vld [vmem:[#allocation6 + $0x68] sm:$0xf]
    %v248 = vld [vmem:[#allocation6 + $0x6c] sm:$0xf]
    %v249 = vld [vmem:[#allocation6 + $0x70] sm:$0xf]
    %v250 = vld [vmem:[#allocation6 + $0x74] sm:$0xf]
    %v251 = vld [vmem:[#allocation6 + $0x78] sm:$0xf]
    %v252 = vld [vmem:[#allocation6 + $0x7c] sm:$0xf]
    %v253 = vld [vmem:[#allocation9] sm:$0xf]
    %v254 = vld [vmem:[#allocation9 + $0x4] sm:$0xf]
    %v255 = vld [vmem:[#allocation9 + $0x8] sm:$0xf]
    %v256 = vld [vmem:[#allocation9 + $0xc] sm:$0xf]
    %v257 = vld [vmem:[#allocation9 + $0x10] sm:$0xf]
    %v258 = vld [vmem:[#allocation9 + $0x14] sm:$0xf]
    %v259 = vld [vmem:[#allocation9 + $0x18] sm:$0xf]
    %v260 = vld [vmem:[#allocation9 + $0x1c] sm:$0xf]
    %v261 = vld [vmem:[#allocation9 + $0x20] sm:$0xf]
    %v262 = vld [vmem:[#allocation9 + $0x24] sm:$0xf]
    %v263 = vld [vmem:[#allocation9 + $0x28] sm:$0xf]
    %v264 = vld [vmem:[#allocation9 + $0x2c] sm:$0xf]
    %v265 = vld [vmem:[#allocation9 + $0x30] sm:$0xf]
    %v266 = vld [vmem:[#allocation9 + $0x34] sm:$0xf]
    %v267 = vld [vmem:[#allocation9 + $0x38] sm:$0xf]
    %v268 = vld [vmem:[#allocation9 + $0x3c] sm:$0xf]
    %v301 = vunpack.c.l.b16 %v221
    %v302 = vunpack.c.l.b16 %v222
    %v303 = vunpack.c.l.b16 %v223
    %v304 = vunpack.c.l.b16 %v224
    %v305 = vunpack.c.l.b16 %v225
    %v306 = vunpack.c.l.b16 %v226
    %v307 = vunpack.c.l.b16 %v227
    %v308 = vunpack.c.l.b16 %v228
    %v309 = vunpack.c.l.b16 %v229
    %v310 = vunpack.c.l.b16 %v230
    %v311 = vunpack.c.l.b16 %v231
    %v312 = vunpack.c.l.b16 %v232
    %v313 = vunpack.c.l.b16 %v233
    %v314 = vunpack.c.l.b16 %v234
    %v315 = vunpack.c.l.b16 %v235
    %v316 = vunpack.c.l.b16 %v236
    %v317 = vunpack.c.l.b16 %v237
    %v318 = vunpack.c.l.b16 %v238
    %v319 = vunpack.c.l.b16 %v239
    %v320 = vunpack.c.l.b16 %v240
    %v321 = vunpack.c.l.b16 %v241
    %v322 = vunpack.c.l.b16 %v242
    %v323 = vunpack.c.l.b16 %v243
    %v324 = vunpack.c.l.b16 %v244
    %v325 = vunpack.c.l.b16 %v245
    %v326 = vunpack.c.l.b16 %v246
    %v327 = vunpack.c.l.b16 %v247
    %v328 = vunpack.c.l.b16 %v248
    %v329 = vunpack.c.l.b16 %v249
    %v330 = vunpack.c.l.b16 %v250
    %v331 = vunpack.c.l.b16 %v251
    %v332 = vunpack.c.l.b16 %v252
    %v333 = vpack.c.b16 %v302, %v301
    %v334 = vpack.c.b16 %v304, %v303
    %v335 = vpack.c.b16 %v306, %v305
    %v336 = vpack.c.b16 %v308, %v307
    %v337 = vpack.c.b16 %v310, %v309
    %v338 = vpack.c.b16 %v312, %v311
    %v339 = vpack.c.b16 %v314, %v313
    %v340 = vpack.c.b16 %v316, %v315
    %v341 = vpack.c.b16 %v318, %v317
    %v342 = vpack.c.b16 %v320, %v319
    %v343 = vpack.c.b16 %v322, %v321
    %v344 = vpack.c.b16 %v324, %v323
    %v345 = vpack.c.b16 %v326, %v325
    %v346 = vpack.c.b16 %v328, %v327
    %v347 = vpack.c.b16 %v330, %v329
    %v348 = vpack.c.b16 %v332, %v331
    %v381 = vunpack.c.l.b16 %v253
    %v382 = vunpack.c.l.b16 %v254
    %v383 = vunpack.c.l.b16 %v255
    %v384 = vunpack.c.l.b16 %v256
    %v385 = vunpack.c.l.b16 %v257
    %v386 = vunpack.c.l.b16 %v258
    %v387 = vunpack.c.l.b16 %v259
    %v388 = vunpack.c.l.b16 %v260
    %v389 = vunpack.c.l.b16 %v261
    %v390 = vunpack.c.l.b16 %v262
    %v391 = vunpack.c.l.b16 %v263
    %v392 = vunpack.c.l.b16 %v264
    %v393 = vunpack.c.l.b16 %v265
    %v394 = vunpack.c.l.b16 %v266
    %v395 = vunpack.c.l.b16 %v267
    %v396 = vunpack.c.l.b16 %v268
    %v397 = vpack.c.b16 %v382, %v381
    %v398 = vpack.c.b16 %v384, %v383
    %v399 = vpack.c.b16 %v386, %v385
    %v400 = vpack.c.b16 %v388, %v387
    %v401 = vpack.c.b16 %v390, %v389
    %v402 = vpack.c.b16 %v392, %v391
    %v403 = vpack.c.b16 %v394, %v393
    %v404 = vpack.c.b16 %v396, %v395
    %413 = vmatprep.subr.bf16.mxu0 0
    %414 = vmatpush1.bf16.msra.mxu0 %v404
    %415 = vmatprep.subr.bf16.mxu0 0
    %416 = vmatpush1.bf16.msra.mxu0 %v403
    %417 = vmatprep.subr.bf16.mxu0 0
    %418 = vmatpush1.bf16.msra.mxu0 %v402
    %419 = vmatprep.subr.bf16.mxu0 0
    %420 = vmatpush1.bf16.msra.mxu0 %v401
    %421 = vmatprep.subr.bf16.mxu0 0
    %422 = vmatpush1.bf16.msra.mxu0 %v400
    %423 = vmatprep.subr.bf16.mxu0 0
    %424 = vmatpush1.bf16.msra.mxu0 %v399
    %425 = vmatprep.subr.bf16.mxu0 0
    %426 = vmatpush1.bf16.msra.mxu0 %v398
    %427 = vmatprep.subr.bf16.mxu0 0
    %428 = vmatpush1.bf16.msra.mxu0 %v397
    %429 = vmatprep.subr.bf16.mxu0 0
    %430 = vmatpush2.bf16.msra.mxu0 0
    %431 = vmatprep.subr.bf16.mxu0 0
    %432 = vmatpush2.bf16.msra.mxu0 0
    %433 = vmatprep.subr.bf16.mxu0 0
    %434 = vmatpush2.bf16.msra.mxu0 0
    %435 = vmatprep.subr.bf16.mxu0 0
    %436 = vmatpush2.bf16.msra.mxu0 0
    %437 = vmatprep.subr.bf16.mxu0 0
    %438 = vmatpush2.bf16.msra.mxu0 0
    %439 = vmatprep.subr.bf16.mxu0 0
    %440 = vmatpush2.bf16.msra.mxu0 0
    %441 = vmatprep.subr.bf16.mxu0 0
    %442 = vmatpush2.bf16.msra.mxu0 0
    %443 = vmatprep.subr.bf16.mxu0 0
    %444 = vmatpush2.bf16.msra.mxu0 0
    %445 = vmatprep.mubr.bf16.mxu0 0
    %446 = vmatmul.mubr.bf16.gmra.mxu0 %v333
    %v447 = vpop.f32.mrf.mxu0
    %v448 = vadd.f32 0.0, %v447
    %v449 = vpop.f32.mrf.mxu0
    %v450 = vpop.f32.mrf.mxu0
    %v451 = vadd.f32 0.0, %v450
    %v452 = vpop.f32.mrf.mxu0
    %453 = vmatprep.mubr.bf16.mxu0 0
    %454 = vmatmul.mubr.bf16.gmra.mxu0 %v334
    %v455 = vpop.f32.mrf.mxu0
    %v456 = vadd.f32 0.0, %v455
    %v457 = vpop.f32.mrf.mxu0
    %v458 = vpop.f32.mrf.mxu0
    %v459 = vadd.f32 0.0, %v458
    %v460 = vpop.f32.mrf.mxu0
    %461 = vmatprep.mubr.bf16.mxu0 0
    %462 = vmatmul.mubr.bf16.gmra.mxu0 %v335
    %v463 = vpop.f32.mrf.mxu0
    %v464 = vadd.f32 0.0, %v463
    %v465 = vpop.f32.mrf.mxu0
    %v466 = vpop.f32.mrf.mxu0
    %v467 = vadd.f32 0.0, %v466
    %v468 = vpop.f32.mrf.mxu0
    %469 = vmatprep.mubr.bf16.mxu0 0
    %470 = vmatmul.mubr.bf16.gmra.mxu0 %v336
    %v471 = vpop.f32.mrf.mxu0
    %v472 = vadd.f32 0.0, %v471
    %v473 = vpop.f32.mrf.mxu0
    %v474 = vpop.f32.mrf.mxu0
    %v475 = vadd.f32 0.0, %v474
    %v476 = vpop.f32.mrf.mxu0
    %477 = vmatprep.mubr.bf16.mxu0 0
    %478 = vmatmul.mubr.bf16.gmra.mxu0 %v337
    %v479 = vpop.f32.mrf.mxu0
    %v480 = vadd.f32 0.0, %v479
    %v481 = vpop.f32.mrf.mxu0
    %v482 = vpop.f32.mrf.mxu0
    %v483 = vadd.f32 0.0, %v482
    %v484 = vpop.f32.mrf.mxu0
    %485 = vmatprep.mubr.bf16.mxu0 0
    %486 = vmatmul.mubr.bf16.gmra.mxu0 %v338
    %v487 = vpop.f32.mrf.mxu0
    %v488 = vadd.f32 0.0, %v487
    %v489 = vpop.f32.mrf.mxu0
    %v490 = vpop.f32.mrf.mxu0
    %v491 = vadd.f32 0.0, %v490
    %v492 = vpop.f32.mrf.mxu0
    %493 = vmatprep.mubr.bf16.mxu0 0
    %494 = vmatmul.mubr.bf16.gmra.mxu0 %v339
    %v495 = vpop.f32.mrf.mxu0
    %v496 = vadd.f32 0.0, %v495
    %v497 = vpop.f32.mrf.mxu0
    %v498 = vpop.f32.mrf.mxu0
    %v499 = vadd.f32 0.0, %v498
    %v500 = vpop.f32.mrf.mxu0
    %501 = vmatprep.mubr.bf16.mxu0 0
    %502 = vmatmul.mubr.bf16.gmra.mxu0 %v340
    %v503 = vpop.f32.mrf.mxu0
    %v504 = vadd.f32 0.0, %v503
    %v505 = vpop.f32.mrf.mxu0
    %v506 = vpop.f32.mrf.mxu0
    %v507 = vadd.f32 0.0, %v506
    %v508 = vpop.f32.mrf.mxu0
    %509 = vmatprep.mubr.bf16.mxu0 0
    %510 = vmatmul.mubr.bf16.gmra.mxu0 %v341
    %v511 = vpop.f32.mrf.mxu0
    %v512 = vadd.f32 0.0, %v511
    %v513 = vpop.f32.mrf.mxu0
    %v514 = vpop.f32.mrf.mxu0
    %v515 = vadd.f32 0.0, %v514
    %v516 = vpop.f32.mrf.mxu0
    %517 = vmatprep.mubr.bf16.mxu0 0
    %518 = vmatmul.mubr.bf16.gmra.mxu0 %v342
    %v519 = vpop.f32.mrf.mxu0
    %v520 = vadd.f32 0.0, %v519
    %v521 = vpop.f32.mrf.mxu0
    %v522 = vpop.f32.mrf.mxu0
    %v523 = vadd.f32 0.0, %v522
    %v524 = vpop.f32.mrf.mxu0
    %525 = vmatprep.mubr.bf16.mxu0 0
    %526 = vmatmul.mubr.bf16.gmra.mxu0 %v343
    %v527 = vpop.f32.mrf.mxu0
    %v528 = vadd.f32 0.0, %v527
    %v529 = vpop.f32.mrf.mxu0
    %v530 = vpop.f32.mrf.mxu0
    %v531 = vadd.f32 0.0, %v530
    %v532 = vpop.f32.mrf.mxu0
    %533 = vmatprep.mubr.bf16.mxu0 0
    %534 = vmatmul.mubr.bf16.gmra.mxu0 %v344
    %v535 = vpop.f32.mrf.mxu0
    %v536 = vadd.f32 0.0, %v535
    %v537 = vpop.f32.mrf.mxu0
    %v538 = vpop.f32.mrf.mxu0
    %v539 = vadd.f32 0.0, %v538
    %v540 = vpop.f32.mrf.mxu0
    %541 = vmatprep.mubr.bf16.mxu0 0
    %542 = vmatmul.mubr.bf16.gmra.mxu0 %v345
    %v543 = vpop.f32.mrf.mxu0
    %v544 = vadd.f32 0.0, %v543
    %v545 = vpop.f32.mrf.mxu0
    %v546 = vpop.f32.mrf.mxu0
    %v547 = vadd.f32 0.0, %v546
    %v548 = vpop.f32.mrf.mxu0
    %549 = vmatprep.mubr.bf16.mxu0 0
    %550 = vmatmul.mubr.bf16.gmra.mxu0 %v346
    %v551 = vpop.f32.mrf.mxu0
    %v552 = vadd.f32 0.0, %v551
    %v553 = vpop.f32.mrf.mxu0
    %v554 = vpop.f32.mrf.mxu0
    %v555 = vadd.f32 0.0, %v554
    %v556 = vpop.f32.mrf.mxu0
    %557 = vmatprep.mubr.bf16.mxu0 0
    %558 = vmatmul.mubr.bf16.gmra.mxu0 %v347
    %v559 = vpop.f32.mrf.mxu0
    %v560 = vadd.f32 0.0, %v559
    %v561 = vpop.f32.mrf.mxu0
    %v562 = vpop.f32.mrf.mxu0
    %v563 = vadd.f32 0.0, %v562
    %v564 = vpop.f32.mrf.mxu0
    %565 = vmatprep.mubr.bf16.mxu0 0
    %566 = vmatmul.mubr.bf16.gmra.mxu0 %v348
    %v567 = vpop.f32.mrf.mxu0
    %v568 = vadd.f32 0.0, %v567
    %v569 = vpop.f32.mrf.mxu0
    %v570 = vpop.f32.mrf.mxu0
    %v571 = vadd.f32 0.0, %v570
    %v572 = vpop.f32.mrf.mxu0
    %573 = vdwg.mxu0
    %v574 = vld [vmem:[#allocation2] sm:$0x1]
    %v575 = vld [vmem:[#allocation2 + $0x1] sm:$0x1]
    %v578 = vlaneseq
    %v579 = vshrl.u32 %v578, 7
    %v580 = vsub.s32 0, %v579
    %v581 = vrot.slane %v574, %v580
    %v582 = vlaneseq
    %v583 = vshrl.u32 %v582, 7
    %v584 = vsub.s32 0, %v583
    %v585 = vrot.slane %v575, %v584
    %v588 = vadd.f32 %v448, %v581
    %v589 = vadd.f32 %v451, %v581
    %v590 = vadd.f32 %v456, %v581
    %v591 = vadd.f32 %v459, %v581
    %v592 = vadd.f32 %v464, %v581
    %v593 = vadd.f32 %v467, %v581
    %v594 = vadd.f32 %v472, %v581
    %v595 = vadd.f32 %v475, %v581
    %v596 = vadd.f32 %v480, %v581
    %v597 = vadd.f32 %v483, %v581
    %v598 = vadd.f32 %v488, %v581
    %v599 = vadd.f32 %v491, %v581
    %v600 = vadd.f32 %v496, %v581
    %v601 = vadd.f32 %v499, %v581
    %v602 = vadd.f32 %v504, %v581
    %v603 = vadd.f32 %v507, %v581
    %v604 = vadd.f32 %v512, %v585
    %v605 = vadd.f32 %v515, %v585
    %v606 = vadd.f32 %v520, %v585
    %v607 = vadd.f32 %v523, %v585
    %v608 = vadd.f32 %v528, %v585
    %v609 = vadd.f32 %v531, %v585
    %v610 = vadd.f32 %v536, %v585
    %v611 = vadd.f32 %v539, %v585
    %v612 = vadd.f32 %v544, %v585
    %v613 = vadd.f32 %v547, %v585
    %v614 = vadd.f32 %v552, %v585
    %v615 = vadd.f32 %v555, %v585
    %v616 = vadd.f32 %v560, %v585
    %v617 = vadd.f32 %v563, %v585
    %v618 = vadd.f32 %v568, %v585
    %v619 = vadd.f32 %v571, %v585
    %v620 = vtanh.pop %v588
    %v621 = vtanh.pop %v589
    %v622 = vtanh.pop %v590
    %v623 = vtanh.pop %v591
    %v624 = vtanh.pop %v592
    %v625 = vtanh.pop %v593
    %v626 = vtanh.pop %v594
    %v627 = vtanh.pop %v595
    %v628 = vtanh.pop %v596
    %v629 = vtanh.pop %v597
    %v630 = vtanh.pop %v598
    %v631 = vtanh.pop %v599
    %v632 = vtanh.pop %v600
    %v633 = vtanh.pop %v601
    %v634 = vtanh.pop %v602
    %v635 = vtanh.pop %v603
    %v636 = vtanh.pop %v604
    %v637 = vtanh.pop %v605
    %v638 = vtanh.pop %v606
    %v639 = vtanh.pop %v607
    %v640 = vtanh.pop %v608
    %v641 = vtanh.pop %v609
    %v642 = vtanh.pop %v610
    %v643 = vtanh.pop %v611
    %v644 = vtanh.pop %v612
    %v645 = vtanh.pop %v613
    %v646 = vtanh.pop %v614
    %v647 = vtanh.pop %v615
    %v648 = vtanh.pop %v616
    %v649 = vtanh.pop %v617
    %v650 = vtanh.pop %v618
    %v651 = vtanh.pop %v619
    %v652 = vld [vmem:[%s5] sm:$0x1]
    %v654 = vlaneseq
    %v655 = vshrl.u32 %v654, 7
    %v656 = vsub.s32 0, %v655
    %v657 = vrot.slane %v652, %v656
    %v659 = vmul.f32 %v620, %v657
    %v660 = vmul.f32 %v621, %v657
    %v661 = vmul.f32 %v622, %v657
    %v662 = vmul.f32 %v623, %v657
    %v663 = vmul.f32 %v624, %v657
    %v664 = vmul.f32 %v625, %v657
    %v665 = vmul.f32 %v626, %v657
    %v666 = vmul.f32 %v627, %v657
    %v667 = vmul.f32 %v628, %v657
    %v668 = vmul.f32 %v629, %v657
    %v669 = vmul.f32 %v630, %v657
    %v670 = vmul.f32 %v631, %v657
    %v671 = vmul.f32 %v632, %v657
    %v672 = vmul.f32 %v633, %v657
    %v673 = vmul.f32 %v634, %v657
    %v674 = vmul.f32 %v635, %v657
    %v675 = vmul.f32 %v636, %v657
    %v676 = vmul.f32 %v637, %v657
    %v677 = vmul.f32 %v638, %v657
    %v678 = vmul.f32 %v639, %v657
    %v679 = vmul.f32 %v640, %v657
    %v680 = vmul.f32 %v641, %v657
    %v681 = vmul.f32 %v642, %v657
    %v682 = vmul.f32 %v643, %v657
    %v683 = vmul.f32 %v644, %v657
    %v684 = vmul.f32 %v645, %v657
    %v685 = vmul.f32 %v646, %v657
    %v686 = vmul.f32 %v647, %v657
    %v687 = vmul.f32 %v648, %v657
    %v688 = vmul.f32 %v649, %v657
    %v689 = vmul.f32 %v650, %v657
    %v690 = vmul.f32 %v651, %v657
    %691 = vadd.xlane.f32.xlu0 %v659
    %v692 = vpop.xlane.xlu0 %691
    %693 = vadd.xlane.f32.xlu0 %v660
    %v694 = vpop.xlane.xlu0 %693
    %695 = vadd.xlane.f32.xlu0 %v661
    %v696 = vpop.xlane.xlu0 %695
    %697 = vadd.xlane.f32.xlu0 %v662
    %v698 = vpop.xlane.xlu0 %697
    %699 = vadd.xlane.f32.xlu0 %v663
    %v700 = vpop.xlane.xlu0 %699
    %701 = vadd.xlane.f32.xlu0 %v664
    %v702 = vpop.xlane.xlu0 %701
    %703 = vadd.xlane.f32.xlu0 %v665
    %v704 = vpop.xlane.xlu0 %703
    %705 = vadd.xlane.f32.xlu0 %v666
    %v706 = vpop.xlane.xlu0 %705
    %707 = vadd.xlane.f32.xlu0 %v667
    %v708 = vpop.xlane.xlu0 %707
    %709 = vadd.xlane.f32.xlu0 %v668
    %v710 = vpop.xlane.xlu0 %709
    %711 = vadd.xlane.f32.xlu0 %v669
    %v712 = vpop.xlane.xlu0 %711
    %713 = vadd.xlane.f32.xlu0 %v670
    %v714 = vpop.xlane.xlu0 %713
    %715 = vadd.xlane.f32.xlu0 %v671
    %v716 = vpop.xlane.xlu0 %715
    %717 = vadd.xlane.f32.xlu0 %v672
    %v718 = vpop.xlane.xlu0 %717
    %719 = vadd.xlane.f32.xlu0 %v673
    %v720 = vpop.xlane.xlu0 %719
    %721 = vadd.xlane.f32.xlu0 %v674
    %v722 = vpop.xlane.xlu0 %721
    %723 = vadd.xlane.f32.xlu0 %v675
    %v724 = vpop.xlane.xlu0 %723
    %725 = vadd.xlane.f32.xlu0 %v676
    %v726 = vpop.xlane.xlu0 %725
    %727 = vadd.xlane.f32.xlu0 %v677
    %v728 = vpop.xlane.xlu0 %727
    %729 = vadd.xlane.f32.xlu0 %v678
    %v730 = vpop.xlane.xlu0 %729
    %731 = vadd.xlane.f32.xlu0 %v679
    %v732 = vpop.xlane.xlu0 %731
    %733 = vadd.xlane.f32.xlu0 %v680
    %v734 = vpop.xlane.xlu0 %733
    %735 = vadd.xlane.f32.xlu0 %v681
    %v736 = vpop.xlane.xlu0 %735
    %737 = vadd.xlane.f32.xlu0 %v682
    %v738 = vpop.xlane.xlu0 %737
    %739 = vadd.xlane.f32.xlu0 %v683
    %v740 = vpop.xlane.xlu0 %739
    %741 = vadd.xlane.f32.xlu0 %v684
    %v742 = vpop.xlane.xlu0 %741
    %743 = vadd.xlane.f32.xlu0 %v685
    %v744 = vpop.xlane.xlu0 %743
    %745 = vadd.xlane.f32.xlu0 %v686
    %v746 = vpop.xlane.xlu0 %745
    %747 = vadd.xlane.f32.xlu0 %v687
    %v748 = vpop.xlane.xlu0 %747
    %749 = vadd.xlane.f32.xlu0 %v688
    %v750 = vpop.xlane.xlu0 %749
    %751 = vadd.xlane.f32.xlu0 %v689
    %v752 = vpop.xlane.xlu0 %751
    %753 = vadd.xlane.f32.xlu0 %v690
    %v754 = vpop.xlane.xlu0 %753
    %s755 = smul.u32 0, 128
    %v788 = vlaneseq
    %v789 = vand.u32 %v788, 127
    %v790 = vlaneseq
    %v791 = vshrl.u32 %v790, 7
    %v792 = vsub.s32 %v789, %v791
    %v793 = vrot.slane %v692, %v792
    %v794 = vadd.s32 %v789, 4294967288
    %v795 = vlaneseq
    %v796 = vshrl.u32 %v795, 7
    %v797 = vsub.s32 %v794, %v796
    %v798 = vrot.slane %v694, %v797
    %vm799 = vcmask 130112
    %v800 = vsel %vm799, %v798, %v793
    %v801 = vadd.s32 %v789, 4294967280
    %v802 = vlaneseq
    %v803 = vshrl.u32 %v802, 7
    %v804 = vsub.s32 %v801, %v803
    %v805 = vrot.slane %v696, %v804
    %vm806 = vcmask 195712
    %v807 = vsel %vm806, %v805, %v800
    %v808 = vadd.s32 %v789, 4294967272
    %v809 = vlaneseq
    %v810 = vshrl.u32 %v809, 7
    %v811 = vsub.s32 %v808, %v810
    %v812 = vrot.slane %v698, %v811
    %vm813 = vcmask 261312
    %v814 = vsel %vm813, %v812, %v807
    %v815 = vadd.s32 %v789, 4294967264
    %v816 = vlaneseq
    %v817 = vshrl.u32 %v816, 7
    %v818 = vsub.s32 %v815, %v817
    %v819 = vrot.slane %v700, %v818
    %vm820 = vcmask 326912
    %v821 = vsel %vm820, %v819, %v814
    %v822 = vadd.s32 %v789, 4294967256
    %v823 = vlaneseq
    %v824 = vshrl.u32 %v823, 7
    %v825 = vsub.s32 %v822, %v824
    %v826 = vrot.slane %v702, %v825
    %vm827 = vcmask 392512
    %v828 = vsel %vm827, %v826, %v821
    %v829 = vadd.s32 %v789, 4294967248
    %v830 = vlaneseq
    %v831 = vshrl.u32 %v830, 7
    %v832 = vsub.s32 %v829, %v831
    %v833 = vrot.slane %v704, %v832
    %vm834 = vcmask 458112
    %v835 = vsel %vm834, %v833, %v828
    %v836 = vadd.s32 %v789, 4294967240
    %v837 = vlaneseq
    %v838 = vshrl.u32 %v837, 7
    %v839 = vsub.s32 %v836, %v838
    %v840 = vrot.slane %v706, %v839
    %vm841 = vcmask 523712
    %v842 = vsel %vm841, %v840, %v835
    %v843 = vadd.s32 %v789, 4294967232
    %v844 = vlaneseq
    %v845 = vshrl.u32 %v844, 7
    %v846 = vsub.s32 %v843, %v845
    %v847 = vrot.slane %v708, %v846
    %vm848 = vcmask 589312
    %v849 = vsel %vm848, %v847, %v842
    %v850 = vadd.s32 %v789, 4294967224
    %v851 = vlaneseq
    %v852 = vshrl.u32 %v851, 7
    %v853 = vsub.s32 %v850, %v852
    %v854 = vrot.slane %v710, %v853
    %vm855 = vcmask 654912
    %v856 = vsel %vm855, %v854, %v849
    %v857 = vadd.s32 %v789, 4294967216
    %v858 = vlaneseq
    %v859 = vshrl.u32 %v858, 7
    %v860 = vsub.s32 %v857, %v859
    %v861 = vrot.slane %v712, %v860
    %vm862 = vcmask 720512
    %v863 = vsel %vm862, %v861, %v856
    %v864 = vadd.s32 %v789, 4294967208
    %v865 = vlaneseq
    %v866 = vshrl.u32 %v865, 7
    %v867 = vsub.s32 %v864, %v866
    %v868 = vrot.slane %v714, %v867
    %vm869 = vcmask 786112
    %v870 = vsel %vm869, %v868, %v863
    %v871 = vadd.s32 %v789, 4294967200
    %v872 = vlaneseq
    %v873 = vshrl.u32 %v872, 7
    %v874 = vsub.s32 %v871, %v873
    %v875 = vrot.slane %v716, %v874
    %vm876 = vcmask 851712
    %v877 = vsel %vm876, %v875, %v870
    %v878 = vadd.s32 %v789, 4294967192
    %v879 = vlaneseq
    %v880 = vshrl.u32 %v879, 7
    %v881 = vsub.s32 %v878, %v880
    %v882 = vrot.slane %v718, %v881
    %vm883 = vcmask 917312
    %v884 = vsel %vm883, %v882, %v877
    %v885 = vadd.s32 %v789, 4294967184
    %v886 = vlaneseq
    %v887 = vshrl.u32 %v886, 7
    %v888 = vsub.s32 %v885, %v887
    %v889 = vrot.slane %v720, %v888
    %vm890 = vcmask 982912
    %v891 = vsel %vm890, %v889, %v884
    %v892 = vadd.s32 %v789, 4294967176
    %v893 = vlaneseq
    %v894 = vshrl.u32 %v893, 7
    %v895 = vsub.s32 %v892, %v894
    %v896 = vrot.slane %v722, %v895
    %vm897 = vcmask 1048512
    %v898 = vsel %vm897, %v896, %v891
    %v899 = vlaneseq
    %v900 = vshrl.u32 %v899, 7
    %v901 = vsub.s32 %v789, %v900
    %v902 = vrot.slane %v724, %v901
    %v903 = vlaneseq
    %v904 = vshrl.u32 %v903, 7
    %v905 = vsub.s32 %v794, %v904
    %v906 = vrot.slane %v726, %v905
    %v907 = vsel %vm799, %v906, %v902
    %v908 = vlaneseq
    %v909 = vshrl.u32 %v908, 7
    %v910 = vsub.s32 %v801, %v909
    %v911 = vrot.slane %v728, %v910
    %v912 = vsel %vm806, %v911, %v907
    %v913 = vlaneseq
    %v914 = vshrl.u32 %v913, 7
    %v915 = vsub.s32 %v808, %v914
    %v916 = vrot.slane %v730, %v915
    %v917 = vsel %vm813, %v916, %v912
    %v918 = vlaneseq
    %v919 = vshrl.u32 %v918, 7
    %v920 = vsub.s32 %v815, %v919
    %v921 = vrot.slane %v732, %v920
    %v922 = vsel %vm820, %v921, %v917
    %v923 = vlaneseq
    %v924 = vshrl.u32 %v923, 7
    %v925 = vsub.s32 %v822, %v924
    %v926 = vrot.slane %v734, %v925
    %v927 = vsel %vm827, %v926, %v922
    %v928 = vlaneseq
    %v929 = vshrl.u32 %v928, 7
    %v930 = vsub.s32 %v829, %v929
    %v931 = vrot.slane %v736, %v930
    %v932 = vsel %vm834, %v931, %v927
    %v933 = vlaneseq
    %v934 = vshrl.u32 %v933, 7
    %v935 = vsub.s32 %v836, %v934
    %v936 = vrot.slane %v738, %v935
    %v937 = vsel %vm841, %v936, %v932
    %v938 = vlaneseq
    %v939 = vshrl.u32 %v938, 7
    %v940 = vsub.s32 %v843, %v939
    %v941 = vrot.slane %v740, %v940
    %v942 = vsel %vm848, %v941, %v937
    %v943 = vlaneseq
    %v944 = vshrl.u32 %v943, 7
    %v945 = vsub.s32 %v850, %v944
    %v946 = vrot.slane %v742, %v945
    %v947 = vsel %vm855, %v946, %v942
    %v948 = vlaneseq
    %v949 = vshrl.u32 %v948, 7
    %v950 = vsub.s32 %v857, %v949
    %v951 = vrot.slane %v744, %v950
    %v952 = vsel %vm862, %v951, %v947
    %v953 = vlaneseq
    %v954 = vshrl.u32 %v953, 7
    %v955 = vsub.s32 %v864, %v954
    %v956 = vrot.slane %v746, %v955
    %v957 = vsel %vm869, %v956, %v952
    %v958 = vlaneseq
    %v959 = vshrl.u32 %v958, 7
    %v960 = vsub.s32 %v871, %v959
    %v961 = vrot.slane %v748, %v960
    %v962 = vsel %vm876, %v961, %v957
    %v963 = vlaneseq
    %v964 = vshrl.u32 %v963, 7
    %v965 = vsub.s32 %v878, %v964
    %v966 = vrot.slane %v750, %v965
    %v967 = vsel %vm883, %v966, %v962
    %v968 = vlaneseq
    %v969 = vshrl.u32 %v968, 7
    %v970 = vsub.s32 %v885, %v969
    %v971 = vrot.slane %v752, %v970
    %v972 = vsel %vm890, %v971, %v967
    %v973 = vlaneseq
    %v974 = vshrl.u32 %v973, 7
    %v975 = vsub.s32 %v892, %v974
    %v976 = vrot.slane %v754, %v975
    %v977 = vsel %vm897, %v976, %v972
    %vm978 = vcmask 1041409
    %v979 = vsel %vm978, %v977, %v898
    %s981 = sshra.s32 %s755, 7
    %s982 = sand.u32 %s755, 127
    %s983 = scalar_lea.vmem [#allocation11], %s981
    %984 = vst [vmem:[%s983] sm:$0x3] %v979
    // Predicated region
    $region46: #{tpu_custom_call.1} parent=1 // pred_check
      %p985 = pneg %p78
    $region47: #{tpu_custom_call.1} parent=1 // pred_check_branch
      %987 = sbr.rel (%p985) target = $region49
    $region48: #{tpu_custom_call.1} parent=1 // pred_region
      %v988 = vld [vmem:[#allocation11] sm:$0x3]
      %vm989 = vcmp.lt.s32.totalorder %v789, 8
      %v990 = vsel %vm989, %v988, -inf
      %vm991 = vcmask 1041408
      %v992 = vsel %vm991, %v990, -inf
      %993 = vmax.xlane.f32.xlu0 %v992
      %v994 = vpop.xlane.xlu0 %993
      %v995 = vsub.f32 %v990, %v994
      %v996 = vmul.f32 %v995, 1.442695
      %v997 = vpow.pop %v996
      %v998 = vsel %vm991, %v997, 0.0
      %999 = vadd.xlane.f32.xlu0 %v998
      %v1000 = vpop.xlane.xlu0 %999
      %v1001 = vrcp.pop %v1000
      %v1002 = vmul.f32 %v997, %v1001
      %1003 = vst [vmem:[#allocation11] sm:$0x3] %v1002
    $region49: #{tpu_custom_call.1} parent=1 // pred_fallthru
      _
    // Predicated region
    $region50: #{tpu_custom_call.1} parent=1 // pred_check
      _
    $region51: #{tpu_custom_call.1} parent=1 // pred_check_branch
      %1005 = sbr.rel (0) target = $region53
    $region52: #{tpu_custom_call.1} parent=1 // pred_region
      %s1007 = ssub.s32 32, 32
      %1008 = vsyncadd [#allocation5], %s1007
      %s1010 = sshll.u32 [#allocation11], 4
      %s1011 = int_to_ptr.vmem [resolvable:$true] %s1010
      %1013 = dma.vmem_to_hbm [thread:$0]  %s1011, 32, %s6, [#allocation5]
    $region53: #{tpu_custom_call.1} parent=1 // pred_fallthru
      _
    // Predicated region
    $region54: #{tpu_custom_call.1} parent=1 // pred_check
      _
    $region55: #{tpu_custom_call.1} parent=1 // pred_check_branch
      %1015 = sbr.rel (0) target = $region57
    $region56: #{tpu_custom_call.1} parent=1 // pred_region
      %1016 = dma.done [#allocation5], 32
    $region57: #{tpu_custom_call.1} parent=1 // pred_fallthru
      _
    %1017 = vsyncpa [#allocation4], 1
    %1018 = vsyncpa [#allocation7], 1
    %1019 = vsyncpa [#allocation10], 1
    %1020 = vsyncpa [#allocation5], 1

</llo_original>
